<compile_context>
chip_gen: v5e
topology: v5e:2x2
jax: 0.10.0
libtpu: 0.0.40
codegen_flags: <defaults>
</compile_context>

<pallas_src>
import math

import jax
import jax.numpy as jnp
from jax.experimental import pallas as pl
from jax.experimental.pallas import tpu as pltpu

_LANE = 128
_MAX_LANE_DIM = 32768                     # keep the lane-dense last dim <= 32K
_TARGET_BLOCK_BYTES = 4 * 1024 * 1024     # ~4 MiB/block: 2 bufs x (in+out) = 16 MiB


def _identity_kernel(x_ref, o_ref):
    # Entire "forward" of the abstract BaseModel: pass data through unchanged.
    o_ref[...] = x_ref[...]


def _lane_dense_view(total: int):
    """Pick (rows, lanes): lanes = largest multiple of 128 <= cap dividing total."""
    if total % _LANE != 0:
        return None
    cap = min(total, _MAX_LANE_DIM)
    lanes = cap - (cap % _LANE)
    while lanes >= _LANE:
        if total % lanes == 0:
            return total // lanes, lanes
        lanes -= _LANE
    return None


@jax.jit
def base_model_forward(x: jax.Array) -> jax.Array:
    """Identity forward for BaseModel, implemented as a Pallas TPU kernel."""
    orig_shape = x.shape
    itemsize = jnp.dtype(x.dtype).itemsize
    total = math.prod(orig_shape) if orig_shape else 1

    view = _lane_dense_view(total)
    if view is None:
        # Fallback (element count not a multiple of 128): single full-array
        # block — block dims equal the array dims, so the (8,128) divisibility
        # constraint does not apply.
        if len(orig_shape) > 1:
            rows, lanes = total // orig_shape[-1], orig_shape[-1]
        else:
            rows, lanes = 1, total
        tile_rows = rows
    else:
        rows, lanes = view
        # Sublane alignment: 8 rows for 32-bit, 16 for 16-bit, 32 for 8-bit.
        sub_mult = 8 * max(1, 4 // itemsize)
        target_rows = max(
            sub_mult,
            (_TARGET_BLOCK_BYTES // (lanes * itemsize)) // sub_mult * sub_mult,
        )
        tile_rows = min(rows, target_rows)
        if tile_rows % sub_mult != 0:
            # Small array: take the whole row axis in one block (a full-dim
            # block is always legal).
            tile_rows = rows

    x2d = x.reshape(rows, lanes)
    grid = (pl.cdiv(rows, tile_rows),)   # ragged last block masked by Pallas

    out2d = pl.pallas_call(
        _identity_kernel,
        out_shape=jax.ShapeDtypeStruct((rows, lanes), x.dtype),
        grid_spec=pltpu.PrefetchScalarGridSpec(
            num_scalar_prefetch=0,
            grid=grid,
            in_specs=[pl.BlockSpec((tile_rows, lanes), lambda i: (i, 0))],
            out_specs=pl.BlockSpec((tile_rows, lanes), lambda i: (i, 0)),
        ),
        compiler_params=pltpu.CompilerParams(
            dimension_semantics=("parallel",),
            vmem_limit_bytes=32 * 1024 * 1024,
        ),
        # Identity: let the output reuse (alias) the input buffer so the copy
        # becomes a no-op whenever the caller's buffer is donatable.
        input_output_aliases={0: 0},
        cost_estimate=pl.CostEstimate(
            flops=0,
            transcendentals=0,
            bytes_accessed=2 * total * itemsize,
        ),
    )(x2d)

    return out2d.reshape(orig_shape)


if __name__ == "__main__":
    key = jax.random.PRNGKey(0)
    # Small NCHW input consistent with an image-model base class.
    x = jax.random.normal(key, (2, 4, 16, 16), dtype=jnp.float32)

    y = base_model_forward(x)
    y = jax.block_until_ready(y)

    # Identity semantics check (the abstract BaseModel has no parameters /
    # no transformation of its own).
    assert y.shape == x.shape and y.dtype == x.dtype
    assert bool(jnp.allclose(y, x)), "identity forward mismatch"

    print("KERNEL_OK")
</pallas_src>

<mosaic_0001>
module attributes {stable_mosaic.version = 11 : i64} {
  func.func @_identity_kernel(%arg0: i32, %arg1: memref<1x2048xf32, #tpu.memory_space<vmem>>, %arg2: memref<1x2048xf32, #tpu.memory_space<vmem>>) attributes {dimension_semantics = [#tpu.dimension_semantics<parallel>], iteration_bounds = array<i64: 1>, scalar_prefetch = 0 : i64, scratch_operands = 0 : i64, tpu.core_type = #tpu.core_type<tc>, window_params = [{transform_indices = @transform_0, window_bounds = array<i64: 1, 2048>}, {transform_indices = @transform_1, window_bounds = array<i64: 1, 2048>}]} {
    %c0 = arith.constant 0 : index
    %c0_0 = arith.constant 0 : index
    %0 = vector.load %arg1[%c0, %c0_0] : memref<1x2048xf32, #tpu.memory_space<vmem>>, vector<1x2048xf32>
    %c0_1 = arith.constant 0 : index
    %c0_2 = arith.constant 0 : index
    %1 = vector.load %arg2[%c0_1, %c0_2] : memref<1x2048xf32, #tpu.memory_space<vmem>>, vector<1x2048xf32>
    tpu.vector_store %arg2[%c0_1, %c0_2], %0 {strides = array<i32>} : memref<1x2048xf32, #tpu.memory_space<vmem>>, vector<1x2048xf32>,
    return
  }
  func.func @transform_0(%arg0: i32) -> (i32, i32) {
    %c0_i32 = arith.constant 0 : i32
    %c0_i32_0 = arith.constant 0 : i32
    return %arg0, %c0_i32 : i32, i32
  }
  func.func @transform_1(%arg0: i32) -> (i32, i32) {
    %c0_i32 = arith.constant 0 : i32
    %c0_i32_0 = arith.constant 0 : i32
    return %arg0, %c0_i32 : i32, i32
  }
}

</mosaic_0001>

<llo_original>
// kernel: base_model_forward.1
$region0: #{base_model_forward.1}
  #allocation0 [shape = 'u32[]', space=smem, size = 0x4, offset = 0x4, fixed_abs, tag = 'smem constant byte address 0x4 - core index']
  #allocation1 [shape = 'u32[72,128]{1,0:T(1,128)}', space=vmem, size = 0x9000, scoped, tag = 'internal scratch']
  %s0 = inlined_call_operand.vmem [shape: f32[1,2048], index: 0, kind: input, shape index: {}, may-alias: {0,1}]
  %s1 = inlined_call_operand.vmem [shape: f32[1,2048], index: 1, kind: output, shape index: {}, may-alias: {0,1}]
  %s2 = sld [smem:[#allocation0]]
  $region14: #{base_model_forward.1} parent=0
    _
  %s4 = ssub.s32 1, %s2
  %s5 = scalar_select 0, %s4, %s2
  // Predicated region
  $region2: #{base_model_forward.1} parent=0 // pred_check
    _
  $region3: #{base_model_forward.1} parent=0 // pred_check_branch
    %7 = sbr.rel (0) target = $region5
  $region4: #{base_model_forward.1} parent=0 // pred_region
    _
  $region5: #{base_model_forward.1} parent=0 // pred_fallthru
    _
  %v8 = vld [vmem:[%s0] sm:$0xff]
  %v9 = vld [vmem:[%s0 + $0x8] sm:$0xff]
  %10 = vst [vmem:[%s1] sm:$0xff] %v8
  %11 = vst [vmem:[%s1 + $0x8] sm:$0xff] %v9
  // Predicated region
  $region6: #{base_model_forward.1} parent=0 // pred_check
    _
  $region7: #{base_model_forward.1} parent=0 // pred_check_branch
    %13 = sbr.rel (0) target = $region9
  $region8: #{base_model_forward.1} parent=0 // pred_region
    _
  $region9: #{base_model_forward.1} parent=0 // pred_fallthru
    _
  // Predicated region
  $region10: #{base_model_forward.1} parent=0 // pred_check
    _
  $region11: #{base_model_forward.1} parent=0 // pred_check_branch
    %15 = sbr.rel (0) target = $region13
  $region12: #{base_model_forward.1} parent=0 // pred_region
    _
  $region13: #{base_model_forward.1} parent=0 // pred_fallthru
    _

</llo_original>
